<compile_context>
chip_gen: v7x
topology: tpu7x:2x2x1
jax: 0.10.0
libtpu: 0.0.40
codegen_flags: <defaults>
</compile_context>

<pallas_src>
import functools

import jax
import jax.numpy as jnp
from jax.experimental import pallas as pl
from jax.experimental.pallas import tpu as pltpu


def _round_up(x, m):
    return ((x + m - 1) // m) * m


def _rot_entries(p):
    """Entries of R = Rz(yaw) @ Ry(pitch) @ Rx(roll), row-major.

    p: (6, TB) with rows [tx, ty, tz, roll, pitch, yaw]; batch on lanes.
    Returns nine (1, TB) arrays.
    """
    roll = p[3:4, :]
    pitch = p[4:5, :]
    yaw = p[5:6, :]
    cr, sr = jnp.cos(roll), jnp.sin(roll)
    cp, sp = jnp.cos(pitch), jnp.sin(pitch)
    cy, sy = jnp.cos(yaw), jnp.sin(yaw)
    return (
        cy * cp, cy * sp * sr - sy * cr, cy * sp * cr + sy * sr,
        sy * cp, sy * sp * sr + cy * cr, sy * sp * cr - cy * sr,
        -sp,     cp * sr,                cp * cr,
    )


def _cubic_loss_kernel(out_ref, tgt_ref, loss_ref, *, batch):
    pid = pl.program_id(0)
    last = pl.num_programs(0) - 1

    @pl.when(pid == 0)
    def _init():
        loss_ref[0, 0] = jnp.float32(0.0)

    o = out_ref[...].astype(jnp.float32)   # (6, TB), batch lane-dense
    t = tgt_ref[...].astype(jnp.float32)   # (6, TB)

    # Rotation-matrix difference, Frobenius-norm squared per lane.
    r1 = _rot_entries(o)
    r2 = _rot_entries(t)
    sq = jnp.zeros_like(o[0:1, :])         # (1, TB)
    for a, b in zip(r1, r2):
        d = a - b
        sq = sq + d * d

    # Translation difference.
    dt = o[0:3, :] - t[0:3, :]             # (3, TB)
    sq = sq + jnp.sum(dt * dt, axis=0, keepdims=True)

    # sum over the 8 cube vertices v in {+-1}^3 of ||dR v + dT||^2
    #   == 8 * (||dR||_F^2 + ||dT||^2)     (exact; cross terms cancel)
    part = 8.0 * jnp.sum(sq)
    loss_ref[0, 0] = loss_ref[0, 0] + part

    @pl.when(pid == last)
    def _finalize():
        loss_ref[0, 0] = loss_ref[0, 0] / jnp.float32(batch)


def cubic_loss(output, target, *, block_lanes=2048):
    """Pallas TPU implementation of cubic_loss.forward(output, target)."""
    assert output.shape == target.shape and output.shape[-1] == 6
    batch = output.shape[0]

    # Batch goes on the lane axis; tile it in chunks of `tb` lanes.
    lane_min = _round_up(max(batch, 1), 128)
    tb = min(block_lanes, lane_min)
    b_pad = _round_up(batch, tb)

    def prep(x):
        # Zero padding is exactly neutral: padded lanes have identical
        # (identity) rotations and zero translations in both inputs.
        if b_pad != batch:
            x = jnp.pad(x, ((0, b_pad - batch), (0, 0)))
        return x.T                          # (6, b_pad), lane-dense batch

    o = prep(output)
    t = prep(target)

    kernel = functools.partial(_cubic_loss_kernel, batch=batch)
    loss = pl.pallas_call(
        kernel,
        out_shape=jax.ShapeDtypeStruct((1, 1), jnp.float32),
        grid_spec=pltpu.PrefetchScalarGridSpec(
            num_scalar_prefetch=0,
            grid=(b_pad // tb,),
            in_specs=[
                pl.BlockSpec((6, tb), lambda i: (0, i)),
                pl.BlockSpec((6, tb), lambda i: (0, i)),
            ],
            out_specs=pl.BlockSpec(memory_space=pltpu.MemorySpace.SMEM),
        ),
        compiler_params=pltpu.CompilerParams(
            dimension_semantics=("arbitrary",)),
    )(o, t)
    return loss[0, 0]


# ----------------------------- pure-JAX reference -----------------------------
_CUBE_VERTS = (
    (-1.0, -1.0,  1.0),
    (-1.0,  1.0,  1.0),
    ( 1.0,  1.0,  1.0),
    ( 1.0, -1.0,  1.0),
    (-1.0, -1.0, -1.0),
    (-1.0,  1.0, -1.0),
    ( 1.0,  1.0, -1.0),
    ( 1.0, -1.0, -1.0),
)


def _ref_cubic_loss(output, target):
    """Explicit 8-vertex computation mirroring the torch module."""
    def vertices(params):
        t = params[:, 0:3]
        roll, pitch, yaw = params[:, 3], params[:, 4], params[:, 5]
        cr, sr = jnp.cos(roll), jnp.sin(roll)
        cp, sp = jnp.cos(pitch), jnp.sin(pitch)
        cy, sy = jnp.cos(yaw), jnp.sin(yaw)
        z = jnp.zeros_like(roll)
        o = jnp.ones_like(roll)
        Rx = jnp.stack([jnp.stack([o, z, z], -1),
                        jnp.stack([z, cr, -sr], -1),
                        jnp.stack([z, sr, cr], -1)], -2)
        Ry = jnp.stack([jnp.stack([cp, z, sp], -1),
                        jnp.stack([z, o, z], -1),
                        jnp.stack([-sp, z, cp], -1)], -2)
        Rz = jnp.stack([jnp.stack([cy, -sy, z], -1),
                        jnp.stack([sy, cy, z], -1),
                        jnp.stack([z, z, o], -1)], -2)
        R = Rz @ Ry @ Rx
        cords = jnp.array(_CUBE_VERTS, dtype=jnp.float32)           # (8, 3)
        return jnp.einsum("bij,vj->bvi", R, cords) + t[:, None, :]   # (B, 8, 3)

    diff = vertices(output) - vertices(target)
    return jnp.sum(diff ** 2) / output.shape[0]


if __name__ == "__main__":
    key = jax.random.PRNGKey(0)
    scale = jnp.array([1.0, 1.0, 1.0, 3.14159, 3.14159, 3.14159], jnp.float32)

    # Primary small-shape check: batch = 2 (same as the module's natural use).
    k1, k2, k3, k4 = jax.random.split(key, 4)
    out2 = jax.random.uniform(k1, (2, 6), jnp.float32, -1.0, 1.0) * scale
    tgt2 = jax.random.uniform(k2, (2, 6), jnp.float32, -1.0, 1.0) * scale
    loss2 = jax.block_until_ready(cubic_loss(out2, tgt2))
    ref2 = jax.block_until_ready(_ref_cubic_loss(out2, tgt2))
    assert jnp.allclose(loss2, ref2, rtol=1e-4, atol=1e-4), (loss2, ref2)

    # Second check exercising zero-padding of a batch not divisible by 128.
    out5 = jax.random.uniform(k3, (5, 6), jnp.float32, -1.0, 1.0) * scale
    tgt5 = jax.random.uniform(k4, (5, 6), jnp.float32, -1.0, 1.0) * scale
    loss5 = jax.block_until_ready(cubic_loss(out5, tgt5))
    ref5 = jax.block_until_ready(_ref_cubic_loss(out5, tgt5))
    assert jnp.allclose(loss5, ref5, rtol=1e-4, atol=1e-4), (loss5, ref5)

    print("KERNEL_OK")
</pallas_src>

<mosaic_0001>
module attributes {stable_mosaic.version = 11 : i64} {
  func.func @_cubic_loss_kernel(%arg0: i32, %arg1: memref<6x128xf32, #tpu.memory_space<vmem>>, %arg2: memref<6x128xf32, #tpu.memory_space<vmem>>, %arg3: memref<1x1xf32, #tpu.memory_space<smem>>) attributes {dimension_semantics = [#tpu.dimension_semantics<arbitrary>], iteration_bounds = array<i64: 1>, scalar_prefetch = 0 : i64, scratch_operands = 0 : i64, tpu.core_type = #tpu.core_type<tc>, window_params = [{transform_indices = @transform_0, window_bounds = array<i64: 6, 128>}, {transform_indices = @transform_1, window_bounds = array<i64: 6, 128>}, {transform_indices = @transform_2, window_bounds = array<i64: 1, 1>}]} {
    %c0_i32 = arith.constant 0 : i32
    %0 = arith.cmpi eq, %arg0, %c0_i32 : i32
    %1 = arith.extui %0 : i1 to i32
    %c0_i32_0 = arith.constant 0 : i32
    %2 = arith.cmpi ne, %1, %c0_i32_0 : i32
    scf.if %2 {
      %cst_15 = arith.constant 0.000000e+00 : f32
      %c0_16 = arith.constant 0 : index
      %c0_17 = arith.constant 0 : index
      %113 = memref.load %arg3[%c0_16, %c0_17] : memref<1x1xf32, #tpu.memory_space<smem>>
      memref.store %cst_15, %arg3[%c0_16, %c0_17] : memref<1x1xf32, #tpu.memory_space<smem>>
    } else {
    }
    %c0 = arith.constant 0 : index
    %c0_1 = arith.constant 0 : index
    %3 = vector.load %arg1[%c0, %c0_1] : memref<6x128xf32, #tpu.memory_space<vmem>>, vector<6x128xf32>
    %c0_2 = arith.constant 0 : index
    %c0_3 = arith.constant 0 : index
    %4 = vector.load %arg2[%c0_2, %c0_3] : memref<6x128xf32, #tpu.memory_space<vmem>>, vector<6x128xf32>
    %5 = vector.extract_strided_slice %3 {offsets = [3, 0], sizes = [1, 128], strides = [1, 1]} : vector<6x128xf32> to vector<1x128xf32>
    %6 = vector.extract_strided_slice %3 {offsets = [4, 0], sizes = [1, 128], strides = [1, 1]} : vector<6x128xf32> to vector<1x128xf32>
    %7 = vector.extract_strided_slice %3 {offsets = [5, 0], sizes = [1, 128], strides = [1, 1]} : vector<6x128xf32> to vector<1x128xf32>
    %8 = math.cos %5 : vector<1x128xf32>
    %9 = math.sin %5 : vector<1x128xf32>
    %10 = math.cos %6 : vector<1x128xf32>
    %11 = math.sin %6 : vector<1x128xf32>
    %12 = math.cos %7 : vector<1x128xf32>
    %13 = math.sin %7 : vector<1x128xf32>
    %14 = arith.mulf %12, %10 : vector<1x128xf32>
    %15 = arith.mulf %12, %11 : vector<1x128xf32>
    %16 = arith.mulf %15, %9 : vector<1x128xf32>
    %17 = arith.mulf %13, %8 : vector<1x128xf32>
    %18 = arith.subf %16, %17 : vector<1x128xf32>
    %19 = arith.mulf %12, %11 : vector<1x128xf32>
    %20 = arith.mulf %19, %8 : vector<1x128xf32>
    %21 = arith.mulf %13, %9 : vector<1x128xf32>
    %22 = arith.addf %20, %21 : vector<1x128xf32>
    %23 = arith.mulf %13, %10 : vector<1x128xf32>
    %24 = arith.mulf %13, %11 : vector<1x128xf32>
    %25 = arith.mulf %24, %9 : vector<1x128xf32>
    %26 = arith.mulf %12, %8 : vector<1x128xf32>
    %27 = arith.addf %25, %26 : vector<1x128xf32>
    %28 = arith.mulf %13, %11 : vector<1x128xf32>
    %29 = arith.mulf %28, %8 : vector<1x128xf32>
    %30 = arith.mulf %12, %9 : vector<1x128xf32>
    %31 = arith.subf %29, %30 : vector<1x128xf32>
    %cst = arith.constant 0.000000e+00 : f32
    %32 = vector.broadcast %cst : f32 to vector<1x128xf32>
    %33 = arith.subf %32, %11 : vector<1x128xf32>
    %34 = arith.mulf %10, %9 : vector<1x128xf32>
    %35 = arith.mulf %10, %8 : vector<1x128xf32>
    %36 = vector.extract_strided_slice %4 {offsets = [3, 0], sizes = [1, 128], strides = [1, 1]} : vector<6x128xf32> to vector<1x128xf32>
    %37 = vector.extract_strided_slice %4 {offsets = [4, 0], sizes = [1, 128], strides = [1, 1]} : vector<6x128xf32> to vector<1x128xf32>
    %38 = vector.extract_strided_slice %4 {offsets = [5, 0], sizes = [1, 128], strides = [1, 1]} : vector<6x128xf32> to vector<1x128xf32>
    %39 = math.cos %36 : vector<1x128xf32>
    %40 = math.sin %36 : vector<1x128xf32>
    %41 = math.cos %37 : vector<1x128xf32>
    %42 = math.sin %37 : vector<1x128xf32>
    %43 = math.cos %38 : vector<1x128xf32>
    %44 = math.sin %38 : vector<1x128xf32>
    %45 = arith.mulf %43, %41 : vector<1x128xf32>
    %46 = arith.mulf %43, %42 : vector<1x128xf32>
    %47 = arith.mulf %46, %40 : vector<1x128xf32>
    %48 = arith.mulf %44, %39 : vector<1x128xf32>
    %49 = arith.subf %47, %48 : vector<1x128xf32>
    %50 = arith.mulf %43, %42 : vector<1x128xf32>
    %51 = arith.mulf %50, %39 : vector<1x128xf32>
    %52 = arith.mulf %44, %40 : vector<1x128xf32>
    %53 = arith.addf %51, %52 : vector<1x128xf32>
    %54 = arith.mulf %44, %41 : vector<1x128xf32>
    %55 = arith.mulf %44, %42 : vector<1x128xf32>
    %56 = arith.mulf %55, %40 : vector<1x128xf32>
    %57 = arith.mulf %43, %39 : vector<1x128xf32>
    %58 = arith.addf %56, %57 : vector<1x128xf32>
    %59 = arith.mulf %44, %42 : vector<1x128xf32>
    %60 = arith.mulf %59, %39 : vector<1x128xf32>
    %61 = arith.mulf %43, %40 : vector<1x128xf32>
    %62 = arith.subf %60, %61 : vector<1x128xf32>
    %cst_4 = arith.constant 0.000000e+00 : f32
    %63 = vector.broadcast %cst_4 : f32 to vector<1x128xf32>
    %64 = arith.subf %63, %42 : vector<1x128xf32>
    %65 = arith.mulf %41, %40 : vector<1x128xf32>
    %66 = arith.mulf %41, %39 : vector<1x128xf32>
    %cst_5 = arith.constant 0.000000e+00 : f32
    %67 = vector.broadcast %cst_5 : f32 to vector<1x128xf32>
    %68 = arith.subf %14, %45 : vector<1x128xf32>
    %69 = arith.mulf %68, %68 : vector<1x128xf32>
    %70 = arith.addf %67, %69 : vector<1x128xf32>
    %71 = arith.subf %18, %49 : vector<1x128xf32>
    %72 = arith.mulf %71, %71 : vector<1x128xf32>
    %73 = arith.addf %70, %72 : vector<1x128xf32>
    %74 = arith.subf %22, %53 : vector<1x128xf32>
    %75 = arith.mulf %74, %74 : vector<1x128xf32>
    %76 = arith.addf %73, %75 : vector<1x128xf32>
    %77 = arith.subf %23, %54 : vector<1x128xf32>
    %78 = arith.mulf %77, %77 : vector<1x128xf32>
    %79 = arith.addf %76, %78 : vector<1x128xf32>
    %80 = arith.subf %27, %58 : vector<1x128xf32>
    %81 = arith.mulf %80, %80 : vector<1x128xf32>
    %82 = arith.addf %79, %81 : vector<1x128xf32>
    %83 = arith.subf %31, %62 : vector<1x128xf32>
    %84 = arith.mulf %83, %83 : vector<1x128xf32>
    %85 = arith.addf %82, %84 : vector<1x128xf32>
    %86 = arith.subf %33, %64 : vector<1x128xf32>
    %87 = arith.mulf %86, %86 : vector<1x128xf32>
    %88 = arith.addf %85, %87 : vector<1x128xf32>
    %89 = arith.subf %34, %65 : vector<1x128xf32>
    %90 = arith.mulf %89, %89 : vector<1x128xf32>
    %91 = arith.addf %88, %90 : vector<1x128xf32>
    %92 = arith.subf %35, %66 : vector<1x128xf32>
    %93 = arith.mulf %92, %92 : vector<1x128xf32>
    %94 = arith.addf %91, %93 : vector<1x128xf32>
    %95 = vector.extract_strided_slice %3 {offsets = [0, 0], sizes = [3, 128], strides = [1, 1]} : vector<6x128xf32> to vector<3x128xf32>
    %96 = vector.extract_strided_slice %4 {offsets = [0, 0], sizes = [3, 128], strides = [1, 1]} : vector<6x128xf32> to vector<3x128xf32>
    %97 = arith.subf %95, %96 : vector<3x128xf32>
    %98 = arith.mulf %97, %97 : vector<3x128xf32>
    %cst_6 = arith.constant dense<0.000000e+00> : vector<128xf32>
    %99 = vector.multi_reduction <add>, %98, %cst_6 [0] : vector<3x128xf32> to vector<128xf32>
    %100 = vector.shape_cast %99 : vector<128xf32> to vector<1x128xf32>
    %101 = arith.addf %94, %100 : vector<1x128xf32>
    %102 = vector.shape_cast %101 : vector<1x128xf32> to vector<1x1x128xf32>
    %cst_7 = arith.constant dense<0.000000e+00> : vector<1xf32>
    %103 = vector.multi_reduction <add>, %102, %cst_7 [1, 2] : vector<1x1x128xf32> to vector<1xf32>
    %104 = vector.shape_cast %103 : vector<1xf32> to vector<1x1x1xf32>
    %105 = vector.extract %104[0, 0, 0] : f32 from vector<1x1x1xf32>
    %cst_8 = arith.constant 8.000000e+00 : f32
    %106 = arith.mulf %cst_8, %105 : f32
    %c0_9 = arith.constant 0 : index
    %c0_10 = arith.constant 0 : index
    %107 = memref.load %arg3[%c0_9, %c0_10] : memref<1x1xf32, #tpu.memory_space<smem>>
    %108 = arith.addf %107, %106 : f32
    %c0_11 = arith.constant 0 : index
    %c0_12 = arith.constant 0 : index
    %109 = memref.load %arg3[%c0_11, %c0_12] : memref<1x1xf32, #tpu.memory_space<smem>>
    memref.store %108, %arg3[%c0_11, %c0_12] : memref<1x1xf32, #tpu.memory_space<smem>>
    %c0_i32_13 = arith.constant 0 : i32
    %110 = arith.cmpi eq, %arg0, %c0_i32_13 : i32
    %111 = arith.extui %110 : i1 to i32
    %c0_i32_14 = arith.constant 0 : i32
    %112 = arith.cmpi ne, %111, %c0_i32_14 : i32
    scf.if %112 {
      %c0_15 = arith.constant 0 : index
      %c0_16 = arith.constant 0 : index
      %113 = memref.load %arg3[%c0_15, %c0_16] : memref<1x1xf32, #tpu.memory_space<smem>>
      %cst_17 = arith.constant 2.000000e+00 : f32
      %114 = arith.divf %113, %cst_17 : f32
      %c0_18 = arith.constant 0 : index
      %c0_19 = arith.constant 0 : index
      %115 = memref.load %arg3[%c0_18, %c0_19] : memref<1x1xf32, #tpu.memory_space<smem>>
      memref.store %114, %arg3[%c0_18, %c0_19] : memref<1x1xf32, #tpu.memory_space<smem>>
    } else {
    }
    return
  }
  func.func @transform_0(%arg0: i32) -> (i32, i32) {
    %c0_i32 = arith.constant 0 : i32
    %c0_i32_0 = arith.constant 0 : i32
    return %c0_i32, %arg0 : i32, i32
  }
  func.func @transform_1(%arg0: i32) -> (i32, i32) {
    %c0_i32 = arith.constant 0 : i32
    %c0_i32_0 = arith.constant 0 : i32
    return %c0_i32, %arg0 : i32, i32
  }
  func.func @transform_2(%arg0: i32) -> (i32, i32) {
    %c0_i32 = arith.constant 0 : i32
    %c0_i32_0 = arith.constant 0 : i32
    %c0_i32_1 = arith.constant 0 : i32
    return %c0_i32, %c0_i32_0 : i32, i32
  }
}

</mosaic_0001>

<llo_original>
// kernel: tpu_custom_call.1
$region0: #{tpu_custom_call.1}
  #allocation0 [shape = 'u32[]', space=smem, size = 0x4, offset = 0x4, fixed_abs, tag = 'smem constant byte address 0x4 - core index']
  #allocation1 [shape = 'u32[144,128]{1,0:T(1,128)}', space=vmem, size = 0x12000, scoped, tag = 'internal scratch']
  %s0 = inlined_call_operand.hbm [shape: f32[6,128], index: 0, kind: input, shape index: {}]
  %s1 = inlined_call_operand.hbm [shape: f32[6,128], index: 1, kind: input, shape index: {}]
  %s2 = inlined_call_operand.hbm [shape: f32[1,1], index: 2, kind: output, shape index: {}]
  %s3 = sld [smem:[#allocation0]]
  $region34: #{tpu_custom_call.1} parent=0
    _
  %s5 = ssub.s32 1, %s3
  %s6 = scalar_select 0, %s5, %s3
  $region1: #{tpu_custom_call.1} parent=0
    #allocation2 [shape = 'u8[4096]{0}', space=vmem, size = 0x1000, scoped, tag = 'input window, operand 0, single buffered']
    #allocation3 [shape = 's32[1]{0}', space=sflag, size = 0x4, scoped, tag = 'scoped memory for tpu_custom_call.1']
    #allocation4 [shape = 's32[1]{0}', space=sflag, size = 0x4, scoped, tag = 'scoped memory for tpu_custom_call.1']
    #allocation5 [shape = 'u8[4096]{0}', space=vmem, size = 0x1000, scoped, tag = 'input window, operand 1, single buffered']
    #allocation6 [shape = 's32[1]{0}', space=sflag, size = 0x4, scoped, tag = 'scoped memory for tpu_custom_call.1']
    #allocation7 [shape = 'u8[512]{0}', space=smem, size = 0x200, scoped, tag = 'output window, operand 0, single buffered']
    %7 = vsyncpa [#allocation3], 0
    %8 = vsyncpa [#allocation6], 0
    %9 = vsyncpa [#allocation4], 0
    // Predicated region
    $region2: #{tpu_custom_call.1} parent=1 // pred_check
      _
    $region3: #{tpu_custom_call.1} parent=1 // pred_check_branch
      %11 = sbr.rel (0) target = $region5
    $region4: #{tpu_custom_call.1} parent=1 // pred_region
      %s13 = ssub.s32 128, 128
      %14 = vsyncadd [#allocation3], %s13
      %s16 = sshll.u32 [#allocation2], 4
      %s17 = int_to_ptr.vmem [resolvable:$true] %s16
      %19 = dma.hbm_to_vmem [thread:$0]  %s0, 128, %s17, [#allocation3]
    $region5: #{tpu_custom_call.1} parent=1 // pred_fallthru
      _
    // Predicated region
    $region6: #{tpu_custom_call.1} parent=1 // pred_check
      _
    $region7: #{tpu_custom_call.1} parent=1 // pred_check_branch
      %21 = sbr.rel (0) target = $region9
    $region8: #{tpu_custom_call.1} parent=1 // pred_region
      %s23 = ssub.s32 128, 128
      %24 = vsyncadd [#allocation6], %s23
      %s26 = sshll.u32 [#allocation5], 4
      %s27 = int_to_ptr.vmem [resolvable:$true] %s26
      %29 = dma.hbm_to_vmem [thread:$0]  %s1, 128, %s27, [#allocation6]
    $region9: #{tpu_custom_call.1} parent=1 // pred_fallthru
      _
    // Predicated region
    $region10: #{tpu_custom_call.1} parent=1 // pred_check
      _
    $region11: #{tpu_custom_call.1} parent=1 // pred_check_branch
      %31 = sbr.rel (0) target = $region13
    $region12: #{tpu_custom_call.1} parent=1 // pred_region
      %32 = dma.done [#allocation3], 128
    $region13: #{tpu_custom_call.1} parent=1 // pred_fallthru
      _
    // Predicated region
    $region14: #{tpu_custom_call.1} parent=1 // pred_check
      _
    $region15: #{tpu_custom_call.1} parent=1 // pred_check_branch
      %34 = sbr.rel (0) target = $region17
    $region16: #{tpu_custom_call.1} parent=1 // pred_region
      %35 = dma.done [#allocation6], 128
    $region17: #{tpu_custom_call.1} parent=1 // pred_fallthru
      _
    %p36 = scmp.eq.s32.totalorder 0, 0
    // Predicated region
    $region18: #{tpu_custom_call.1} parent=1 // pred_check
      %p37 = pneg %p36
    $region19: #{tpu_custom_call.1} parent=1 // pred_check_branch
      %39 = sbr.rel (%p37) target = $region21
    $region20: #{tpu_custom_call.1} parent=1 // pred_region
      %s40 = scalar_lea.smem [#allocation7], 0
      %41 = sst [smem:[%s40]] 0.0
    $region21: #{tpu_custom_call.1} parent=1 // pred_fallthru
      _
    %v42 = vld [vmem:[#allocation2] sm:$0x3f]
    %v43 = vld [vmem:[#allocation5] sm:$0x3f]
    %v44 = vand.u32 2147483647, %v42
    %vm45 = vcmp.le.f32.partialorder %v44, 0.7853982
    %vm46 = vcmp.lt.s32.totalorder %v42, 0
    %v47 = vand.u32 %v42, 2139095040
    %v48 = vshrl.u32 %v47, 23
    %v49 = vsub.s32 %v48, 127
    %v50 = vand.u32 2147483647, %v42
    %v51 = vand.u32 %v50, 8388607
    %v52 = vor.u32 %v51, 8388608
    %v53 = vsub.s32 0, %v52
    %v54 = vadd.s32 %v49, 1
    %vm55 = vcmp.gt.s32.totalorder %v54, 0
    %v56 = vsel %vm55, %v54, 0
    %v57 = vshrl.u32 %v56, 5
    %v58 = vand.u32 %v56, 31
    %v59 = vsub.s32 32, %v58
    %v60 = vshrl.u32 683565275, %v59
    %v61 = vshll.u32 683565275, %v58
    %v62 = vshrl.u32 2475754826, %v59
    %v63 = vor.u32 %v61, %v62
    %v64 = vshll.u32 2475754826, %v58
    %v65 = vshrl.u32 2131351028, %v59
    %v66 = vor.u32 %v64, %v65
    %v67 = vshll.u32 2131351028, %v58
    %v68 = vshrl.u32 2102212464, %v59
    %v69 = vor.u32 %v67, %v68
    %v70 = vshll.u32 2102212464, %v58
    %v71 = vshrl.u32 920167782, %v59
    %v72 = vor.u32 %v70, %v71
    %v73 = vshll.u32 920167782, %v58
    %v74 = vshrl.u32 1326507024, %v59
    %v75 = vor.u32 %v73, %v74
    %vm76 = vcmp.lt.s32.totalorder %v57, 1
    %vm77 = vcmp.lt.s32.totalorder %v57, 2
    %vm78 = vcmp.lt.s32.totalorder %v57, 3
    %vm79 = vcmp.lt.s32.totalorder %v57, 4
    %v80 = vsel %vm76, %v60, %v63
    %v81 = vsel %vm79, %v69, 2102212464
    %v82 = vsel %vm78, %v66, %v81
    %v83 = vsel %vm77, %v80, %v82
    %v84 = vsel %vm76, %v63, %v66
    %v85 = vsel %vm79, %v72, 920167782
    %v86 = vsel %vm78, %v69, %v85
    %v87 = vsel %vm77, %v84, %v86
    %v88 = vsel %vm76, %v66, %v69
    %v89 = vsel %vm79, %v75, 1326507024
    %v90 = vsel %vm78, %v72, %v89
    %v91 = vsel %vm77, %v88, %v90
    %v92 = vshll.u32 %v52, 8
    %v93 = vmul.u32.u64.compose %v92, %v91
    %v94 = vextract.low.u32 %v93
    %v95 = vextract.high.u32 %v93
    %v96 = vmul.u32.u64.compose %v92, %v87
    %v97 = vextract.low.u32 %v96
    %v98 = vextract.high.u32 %v96
    %v99 = vmul.u32 %v92, %v83
    %v100 = vadd.s32 %v95, %v97
    %vm101 = vc.u32 %v95, %v97
    %v102 = vadd.s32 %v98, 1
    %v103 = vsel %vm101, %v102, %v98
    %v104 = vadd.s32 %v99, %v103
    %v105 = vadd.s32 %v104, 536870912
    %v106 = vshrl.u32 %v105, 30
    %v107 = vshll.u32 %v106, 30
    %v108 = vsub.s32 %v104, %v107
    %vm109 = vcmp.lt.s32.totalorder %v108, 0
    %v110 = vsub.s32 0, %v108
    %v111 = vsel %vm109, %v110, %v108
    %v112 = vclz %v111
    %v113 = vsub.s32 %v112, 2
    %vm114 = vcmp.gt.s32.totalorder 0, %v113
    %v115 = vsel %vm114, 0, %v113
    %v116 = vsub.s32 32, %v115
    %v117 = vshll.u32 %v108, %v115
    %v118 = vshrl.u32 %v100, %v116
    %v119 = vor.u32 %v117, %v118
    %v120 = vsub.s32 4294967266, %v115
    %v121 = vadd.s32 %v120, 127
    %v122 = vshll.u32 %v121, 23
    %v123 = vor.u32 4788187, %v122
    %v124 = vand.u32 2147483647, %v123
    %v126 = vcvt.s32.f32 %v119
    %v127 = vmul.f32 %v126, %v124
    %v128 = vxor.u32 %v127, 2147483648
    %v129 = vsel %vm46, %v128, %v127
    %v130 = vsub.s32 4, %v106
    %v131 = vsel %vm46, %v130, %v106
    %v132 = vsel %vm45, %v42, %v129
    %v133 = vsel %vm45, 0, %v131
    %v134 = vcosq.f32.pop %v132
    %v135 = vsinq.f32.pop %v132
    %vm136 = vweird.f32 %v42
    %v137 = vand.u32 %v133, 3
    %vm138 = vcmp.lt.s32.totalorder %v137, 2
    %vm139 = vcmp.eq.s32.totalorder %v137, 0
    %v140 = vxor.u32 %v135, 2147483648
    %v141 = vsel %vm139, %v134, %v140
    %vm142 = vcmp.eq.s32.totalorder %v137, 2
    %v143 = vxor.u32 %v134, 2147483648
    %v144 = vsel %vm142, %v143, %v135
    %v145 = vsel %vm138, %v141, %v144
    %v146 = vsel %vm136, nan, %v145
    %v147 = vand.u32 2147483647, %v42
    %vm148 = vcmp.le.f32.partialorder %v147, 0.7853982
    %vm149 = vcmp.lt.s32.totalorder %v42, 0
    %v150 = vand.u32 %v42, 2139095040
    %v151 = vshrl.u32 %v150, 23
    %v152 = vsub.s32 %v151, 127
    %v153 = vand.u32 2147483647, %v42
    %v154 = vand.u32 %v153, 8388607
    %v155 = vor.u32 %v154, 8388608
    %v156 = vsub.s32 0, %v155
    %v157 = vadd.s32 %v152, 1
    %vm158 = vcmp.gt.s32.totalorder %v157, 0
    %v159 = vsel %vm158, %v157, 0
    %v160 = vshrl.u32 %v159, 5
    %v161 = vand.u32 %v159, 31
    %v162 = vsub.s32 32, %v161
    %v163 = vshrl.u32 683565275, %v162
    %v164 = vshll.u32 683565275, %v161
    %v165 = vshrl.u32 2475754826, %v162
    %v166 = vor.u32 %v164, %v165
    %v167 = vshll.u32 2475754826, %v161
    %v168 = vshrl.u32 2131351028, %v162
    %v169 = vor.u32 %v167, %v168
    %v170 = vshll.u32 2131351028, %v161
    %v171 = vshrl.u32 2102212464, %v162
    %v172 = vor.u32 %v170, %v171
    %v173 = vshll.u32 2102212464, %v161
    %v174 = vshrl.u32 920167782, %v162
    %v175 = vor.u32 %v173, %v174
    %v176 = vshll.u32 920167782, %v161
    %v177 = vshrl.u32 1326507024, %v162
    %v178 = vor.u32 %v176, %v177
    %vm179 = vcmp.lt.s32.totalorder %v160, 1
    %vm180 = vcmp.lt.s32.totalorder %v160, 2
    %vm181 = vcmp.lt.s32.totalorder %v160, 3
    %vm182 = vcmp.lt.s32.totalorder %v160, 4
    %v183 = vsel %vm179, %v163, %v166
    %v184 = vsel %vm182, %v172, 2102212464
    %v185 = vsel %vm181, %v169, %v184
    %v186 = vsel %vm180, %v183, %v185
    %v187 = vsel %vm179, %v166, %v169
    %v188 = vsel %vm182, %v175, 920167782
    %v189 = vsel %vm181, %v172, %v188
    %v190 = vsel %vm180, %v187, %v189
    %v191 = vsel %vm179, %v169, %v172
    %v192 = vsel %vm182, %v178, 1326507024
    %v193 = vsel %vm181, %v175, %v192
    %v194 = vsel %vm180, %v191, %v193
    %v195 = vshll.u32 %v155, 8
    %v196 = vmul.u32.u64.compose %v195, %v194
    %v197 = vextract.low.u32 %v196
    %v198 = vextract.high.u32 %v196
    %v199 = vmul.u32.u64.compose %v195, %v190
    %v200 = vextract.low.u32 %v199
    %v201 = vextract.high.u32 %v199
    %v202 = vmul.u32 %v195, %v186
    %v203 = vadd.s32 %v198, %v200
    %vm204 = vc.u32 %v198, %v200
    %v205 = vadd.s32 %v201, 1
    %v206 = vsel %vm204, %v205, %v201
    %v207 = vadd.s32 %v202, %v206
    %v208 = vadd.s32 %v207, 536870912
    %v209 = vshrl.u32 %v208, 30
    %v210 = vshll.u32 %v209, 30
    %v211 = vsub.s32 %v207, %v210
    %vm212 = vcmp.lt.s32.totalorder %v211, 0
    %v213 = vsub.s32 0, %v211
    %v214 = vsel %vm212, %v213, %v211
    %v215 = vclz %v214
    %v216 = vsub.s32 %v215, 2
    %vm217 = vcmp.gt.s32.totalorder 0, %v216
    %v218 = vsel %vm217, 0, %v216
    %v219 = vsub.s32 32, %v218
    %v220 = vshll.u32 %v211, %v218
    %v221 = vshrl.u32 %v203, %v219
    %v222 = vor.u32 %v220, %v221
    %v223 = vsub.s32 4294967266, %v218
    %v224 = vadd.s32 %v223, 127
    %v225 = vshll.u32 %v224, 23
    %v226 = vor.u32 4788187, %v225
    %v227 = vand.u32 2147483647, %v226
    %v229 = vcvt.s32.f32 %v222
    %v230 = vmul.f32 %v229, %v227
    %v231 = vxor.u32 %v230, 2147483648
    %v232 = vsel %vm149, %v231, %v230
    %v233 = vsub.s32 4, %v209
    %v234 = vsel %vm149, %v233, %v209
    %v235 = vsel %vm148, %v42, %v232
    %v236 = vsel %vm148, 0, %v234
    %v237 = vcosq.f32.pop %v235
    %v238 = vsinq.f32.pop %v235
    %vm239 = vweird.f32 %v42
    %v240 = vadd.s32 %v236, 3
    %v241 = vand.u32 %v240, 3
    %vm242 = vcmp.lt.s32.totalorder %v241, 2
    %vm243 = vcmp.eq.s32.totalorder %v241, 0
    %v244 = vxor.u32 %v238, 2147483648
    %v245 = vsel %vm243, %v237, %v244
    %vm246 = vcmp.eq.s32.totalorder %v241, 2
    %v247 = vxor.u32 %v237, 2147483648
    %v248 = vsel %vm246, %v247, %v238
    %v249 = vsel %vm242, %v245, %v248
    %v250 = vsel %vm239, nan, %v249
    %v252 = vrot.slane %v146, 7
    %v254 = vmul.f32 %v146, %v252
    %v256 = vrot.slane %v250, 7
    %v258 = vmul.f32 %v146, %v256
    %v259 = vrot.slane %v250, 6
    %v261 = vmul.f32 %v258, %v259
    %v262 = vrot.slane %v146, 6
    %v264 = vmul.f32 %v250, %v262
    %v265 = vsub.f32 %v261, %v264
    %v266 = vmul.f32 %v258, %v262
    %v267 = vmul.f32 %v250, %v259
    %v268 = vadd.f32 %v266, %v267
    %v269 = vmul.f32 %v250, %v252
    %v270 = vmul.f32 %v250, %v256
    %v271 = vmul.f32 %v270, %v259
    %v272 = vmul.f32 %v146, %v262
    %v273 = vadd.f32 %v271, %v272
    %v274 = vmul.f32 %v270, %v262
    %v275 = vmul.f32 %v146, %v259
    %v276 = vsub.f32 %v274, %v275
    %v277 = vsub.f32 0.0, %v250
    %v278 = vand.u32 2147483647, %v43
    %vm279 = vcmp.le.f32.partialorder %v278, 0.7853982
    %vm280 = vcmp.lt.s32.totalorder %v43, 0
    %v281 = vand.u32 %v43, 2139095040
    %v282 = vshrl.u32 %v281, 23
    %v283 = vsub.s32 %v282, 127
    %v284 = vand.u32 2147483647, %v43
    %v285 = vand.u32 %v284, 8388607
    %v286 = vor.u32 %v285, 8388608
    %v287 = vsub.s32 0, %v286
    %v288 = vadd.s32 %v283, 1
    %vm289 = vcmp.gt.s32.totalorder %v288, 0
    %v290 = vsel %vm289, %v288, 0
    %v291 = vshrl.u32 %v290, 5
    %v292 = vand.u32 %v290, 31
    %v293 = vsub.s32 32, %v292
    %v294 = vshrl.u32 683565275, %v293
    %v295 = vshll.u32 683565275, %v292
    %v296 = vshrl.u32 2475754826, %v293
    %v297 = vor.u32 %v295, %v296
    %v298 = vshll.u32 2475754826, %v292
    %v299 = vshrl.u32 2131351028, %v293
    %v300 = vor.u32 %v298, %v299
    %v301 = vshll.u32 2131351028, %v292
    %v302 = vshrl.u32 2102212464, %v293
    %v303 = vor.u32 %v301, %v302
    %v304 = vshll.u32 2102212464, %v292
    %v305 = vshrl.u32 920167782, %v293
    %v306 = vor.u32 %v304, %v305
    %v307 = vshll.u32 920167782, %v292
    %v308 = vshrl.u32 1326507024, %v293
    %v309 = vor.u32 %v307, %v308
    %vm310 = vcmp.lt.s32.totalorder %v291, 1
    %vm311 = vcmp.lt.s32.totalorder %v291, 2
    %vm312 = vcmp.lt.s32.totalorder %v291, 3
    %vm313 = vcmp.lt.s32.totalorder %v291, 4
    %v314 = vsel %vm310, %v294, %v297
    %v315 = vsel %vm313, %v303, 2102212464
    %v316 = vsel %vm312, %v300, %v315
    %v317 = vsel %vm311, %v314, %v316
    %v318 = vsel %vm310, %v297, %v300
    %v319 = vsel %vm313, %v306, 920167782
    %v320 = vsel %vm312, %v303, %v319
    %v321 = vsel %vm311, %v318, %v320
    %v322 = vsel %vm310, %v300, %v303
    %v323 = vsel %vm313, %v309, 1326507024
    %v324 = vsel %vm312, %v306, %v323
    %v325 = vsel %vm311, %v322, %v324
    %v326 = vshll.u32 %v286, 8
    %v327 = vmul.u32.u64.compose %v326, %v325
    %v328 = vextract.low.u32 %v327
    %v329 = vextract.high.u32 %v327
    %v330 = vmul.u32.u64.compose %v326, %v321
    %v331 = vextract.low.u32 %v330
    %v332 = vextract.high.u32 %v330
    %v333 = vmul.u32 %v326, %v317
    %v334 = vadd.s32 %v329, %v331
    %vm335 = vc.u32 %v329, %v331
    %v336 = vadd.s32 %v332, 1
    %v337 = vsel %vm335, %v336, %v332
    %v338 = vadd.s32 %v333, %v337
    %v339 = vadd.s32 %v338, 536870912
    %v340 = vshrl.u32 %v339, 30
    %v341 = vshll.u32 %v340, 30
    %v342 = vsub.s32 %v338, %v341
    %vm343 = vcmp.lt.s32.totalorder %v342, 0
    %v344 = vsub.s32 0, %v342
    %v345 = vsel %vm343, %v344, %v342
    %v346 = vclz %v345
    %v347 = vsub.s32 %v346, 2
    %vm348 = vcmp.gt.s32.totalorder 0, %v347
    %v349 = vsel %vm348, 0, %v347
    %v350 = vsub.s32 32, %v349
    %v351 = vshll.u32 %v342, %v349
    %v352 = vshrl.u32 %v334, %v350
    %v353 = vor.u32 %v351, %v352
    %v354 = vsub.s32 4294967266, %v349
    %v355 = vadd.s32 %v354, 127
    %v356 = vshll.u32 %v355, 23
    %v357 = vor.u32 4788187, %v356
    %v358 = vand.u32 2147483647, %v357
    %v360 = vcvt.s32.f32 %v353
    %v361 = vmul.f32 %v360, %v358
    %v362 = vxor.u32 %v361, 2147483648
    %v363 = vsel %vm280, %v362, %v361
    %v364 = vsub.s32 4, %v340
    %v365 = vsel %vm280, %v364, %v340
    %v366 = vsel %vm279, %v43, %v363
    %v367 = vsel %vm279, 0, %v365
    %v368 = vcosq.f32.pop %v366
    %v369 = vsinq.f32.pop %v366
    %vm370 = vweird.f32 %v43
    %v371 = vand.u32 %v367, 3
    %vm372 = vcmp.lt.s32.totalorder %v371, 2
    %vm373 = vcmp.eq.s32.totalorder %v371, 0
    %v374 = vxor.u32 %v369, 2147483648
    %v375 = vsel %vm373, %v368, %v374
    %vm376 = vcmp.eq.s32.totalorder %v371, 2
    %v377 = vxor.u32 %v368, 2147483648
    %v378 = vsel %vm376, %v377, %v369
    %v379 = vsel %vm372, %v375, %v378
    %v380 = vsel %vm370, nan, %v379
    %v381 = vand.u32 2147483647, %v43
    %vm382 = vcmp.le.f32.partialorder %v381, 0.7853982
    %vm383 = vcmp.lt.s32.totalorder %v43, 0
    %v384 = vand.u32 %v43, 2139095040
    %v385 = vshrl.u32 %v384, 23
    %v386 = vsub.s32 %v385, 127
    %v387 = vand.u32 2147483647, %v43
    %v388 = vand.u32 %v387, 8388607
    %v389 = vor.u32 %v388, 8388608
    %v390 = vsub.s32 0, %v389
    %v391 = vadd.s32 %v386, 1
    %vm392 = vcmp.gt.s32.totalorder %v391, 0
    %v393 = vsel %vm392, %v391, 0
    %v394 = vshrl.u32 %v393, 5
    %v395 = vand.u32 %v393, 31
    %v396 = vsub.s32 32, %v395
    %v397 = vshrl.u32 683565275, %v396
    %v398 = vshll.u32 683565275, %v395
    %v399 = vshrl.u32 2475754826, %v396
    %v400 = vor.u32 %v398, %v399
    %v401 = vshll.u32 2475754826, %v395
    %v402 = vshrl.u32 2131351028, %v396
    %v403 = vor.u32 %v401, %v402
    %v404 = vshll.u32 2131351028, %v395
    %v405 = vshrl.u32 2102212464, %v396
    %v406 = vor.u32 %v404, %v405
    %v407 = vshll.u32 2102212464, %v395
    %v408 = vshrl.u32 920167782, %v396
    %v409 = vor.u32 %v407, %v408
    %v410 = vshll.u32 920167782, %v395
    %v411 = vshrl.u32 1326507024, %v396
    %v412 = vor.u32 %v410, %v411
    %vm413 = vcmp.lt.s32.totalorder %v394, 1
    %vm414 = vcmp.lt.s32.totalorder %v394, 2
    %vm415 = vcmp.lt.s32.totalorder %v394, 3
    %vm416 = vcmp.lt.s32.totalorder %v394, 4
    %v417 = vsel %vm413, %v397, %v400
    %v418 = vsel %vm416, %v406, 2102212464
    %v419 = vsel %vm415, %v403, %v418
    %v420 = vsel %vm414, %v417, %v419
    %v421 = vsel %vm413, %v400, %v403
    %v422 = vsel %vm416, %v409, 920167782
    %v423 = vsel %vm415, %v406, %v422
    %v424 = vsel %vm414, %v421, %v423
    %v425 = vsel %vm413, %v403, %v406
    %v426 = vsel %vm416, %v412, 1326507024
    %v427 = vsel %vm415, %v409, %v426
    %v428 = vsel %vm414, %v425, %v427
    %v429 = vshll.u32 %v389, 8
    %v430 = vmul.u32.u64.compose %v429, %v428
    %v431 = vextract.low.u32 %v430
    %v432 = vextract.high.u32 %v430
    %v433 = vmul.u32.u64.compose %v429, %v424
    %v434 = vextract.low.u32 %v433
    %v435 = vextract.high.u32 %v433
    %v436 = vmul.u32 %v429, %v420
    %v437 = vadd.s32 %v432, %v434
    %vm438 = vc.u32 %v432, %v434
    %v439 = vadd.s32 %v435, 1
    %v440 = vsel %vm438, %v439, %v435
    %v441 = vadd.s32 %v436, %v440
    %v442 = vadd.s32 %v441, 536870912
    %v443 = vshrl.u32 %v442, 30
    %v444 = vshll.u32 %v443, 30
    %v445 = vsub.s32 %v441, %v444
    %vm446 = vcmp.lt.s32.totalorder %v445, 0
    %v447 = vsub.s32 0, %v445
    %v448 = vsel %vm446, %v447, %v445
    %v449 = vclz %v448
    %v450 = vsub.s32 %v449, 2
    %vm451 = vcmp.gt.s32.totalorder 0, %v450
    %v452 = vsel %vm451, 0, %v450
    %v453 = vsub.s32 32, %v452
    %v454 = vshll.u32 %v445, %v452
    %v455 = vshrl.u32 %v437, %v453
    %v456 = vor.u32 %v454, %v455
    %v457 = vsub.s32 4294967266, %v452
    %v458 = vadd.s32 %v457, 127
    %v459 = vshll.u32 %v458, 23
    %v460 = vor.u32 4788187, %v459
    %v461 = vand.u32 2147483647, %v460
    %v463 = vcvt.s32.f32 %v456
    %v464 = vmul.f32 %v463, %v461
    %v465 = vxor.u32 %v464, 2147483648
    %v466 = vsel %vm383, %v465, %v464
    %v467 = vsub.s32 4, %v443
    %v468 = vsel %vm383, %v467, %v443
    %v469 = vsel %vm382, %v43, %v466
    %v470 = vsel %vm382, 0, %v468
    %v471 = vcosq.f32.pop %v469
    %v472 = vsinq.f32.pop %v469
    %vm473 = vweird.f32 %v43
    %v474 = vadd.s32 %v470, 3
    %v475 = vand.u32 %v474, 3
    %vm476 = vcmp.lt.s32.totalorder %v475, 2
    %vm477 = vcmp.eq.s32.totalorder %v475, 0
    %v478 = vxor.u32 %v472, 2147483648
    %v479 = vsel %vm477, %v471, %v478
    %vm480 = vcmp.eq.s32.totalorder %v475, 2
    %v481 = vxor.u32 %v471, 2147483648
    %v482 = vsel %vm480, %v481, %v472
    %v483 = vsel %vm476, %v479, %v482
    %v484 = vsel %vm473, nan, %v483
    %v486 = vrot.slane %v380, 7
    %v488 = vmul.f32 %v380, %v486
    %v490 = vrot.slane %v484, 7
    %v492 = vmul.f32 %v380, %v490
    %v493 = vrot.slane %v484, 6
    %v495 = vmul.f32 %v492, %v493
    %v496 = vrot.slane %v380, 6
    %v498 = vmul.f32 %v484, %v496
    %v499 = vsub.f32 %v495, %v498
    %v500 = vmul.f32 %v492, %v496
    %v501 = vmul.f32 %v484, %v493
    %v502 = vadd.f32 %v500, %v501
    %v503 = vmul.f32 %v484, %v486
    %v504 = vmul.f32 %v484, %v490
    %v505 = vmul.f32 %v504, %v493
    %v506 = vmul.f32 %v380, %v496
    %v507 = vadd.f32 %v505, %v506
    %v508 = vmul.f32 %v504, %v496
    %v509 = vmul.f32 %v380, %v493
    %v510 = vsub.f32 %v508, %v509
    %v511 = vsub.f32 0.0, %v484
    %v512 = vsub.f32 %v254, %v488
    %v513 = vmul.f32 %v512, %v512
    %v514 = vadd.f32 %v513, 0.0
    %v515 = vsub.f32 %v265, %v499
    %v516 = vmul.f32 %v515, %v515
    %v517 = vadd.f32 %v514, %v516
    %v518 = vsub.f32 %v268, %v502
    %v519 = vmul.f32 %v518, %v518
    %v520 = vadd.f32 %v517, %v519
    %v521 = vsub.f32 %v269, %v503
    %v522 = vmul.f32 %v521, %v521
    %v523 = vadd.f32 %v520, %v522
    %v524 = vsub.f32 %v273, %v507
    %v525 = vmul.f32 %v524, %v524
    %v526 = vadd.f32 %v523, %v525
    %v527 = vsub.f32 %v276, %v510
    %v528 = vmul.f32 %v527, %v527
    %v529 = vadd.f32 %v526, %v528
    %v530 = vsub.f32 %v277, %v511
    %v531 = vmul.f32 %v530, %v530
    %v533 = vrot.slane %v531, 7
    %v535 = vadd.f32 %v529, %v533
    %v536 = vsub.f32 %v258, %v492
    %v537 = vmul.f32 %v536, %v536
    %v539 = vrot.slane %v537, 7
    %v541 = vadd.f32 %v535, %v539
    %v543 = vrot.slane %v513, 7
    %v545 = vadd.f32 %v541, %v543
    %v546 = vsub.f32 %v42, %v43
    %v547 = vmul.f32 %v546, %v546
    %vm548 = vcmask 1042432
    %v549 = vsel %vm548, %v547, 0.0
    %v550 = vrot.slane %v549, 4
    %v551 = vadd.f32 %v549, %v550
    %v552 = vrot.slane %v551, 2
    %v553 = vadd.f32 %v551, %v552
    %v554 = vrot.slane %v553, 1
    %v555 = vadd.f32 %v553, %v554
    %v556 = vadd.f32 %v545, %v555
    %v558 = vrot.slane %v556, 5
    %vm560 = vcmask 1040384
    %v561 = vsel %vm560, %v558, 0.0
    %562 = vadd.xlane.f32.xlu0 %v561
    %v563 = vpop.xlane.xlu0 %562
    %v564 = vrot.slane %v563, 4
    %v565 = vadd.f32 %v563, %v564
    %v566 = vrot.slane %v565, 2
    %v567 = vadd.f32 %v565, %v566
    %v568 = vrot.slane %v567, 1
    %v569 = vadd.f32 %v567, %v568
    %s570 = vtos %v569
    %s571 = smul.f32 %s570, 8.0
    %s572 = sld [smem:[#allocation7]]
    %s573 = sadd.f32 %s572, %s571
    %s574 = scalar_lea.smem [#allocation7], 0
    %575 = sst [smem:[%s574]] %s573
    // Predicated region
    $region22: #{tpu_custom_call.1} parent=1 // pred_check
      %p576 = pneg %p36
    $region23: #{tpu_custom_call.1} parent=1 // pred_check_branch
      %578 = sbr.rel (%p576) target = $region25
    $region24: #{tpu_custom_call.1} parent=1 // pred_region
      %s579 = sld [smem:[#allocation7]]
      %v580 = vrcp.pop 2.0
      %s581 = vtos %v580
      %s582 = smul.f32 %s579, %s581
      %583 = sst [smem:[%s574]] %s582
    $region25: #{tpu_custom_call.1} parent=1 // pred_fallthru
      _
    // Predicated region
    $region26: #{tpu_custom_call.1} parent=1 // pred_check
      _
    $region27: #{tpu_custom_call.1} parent=1 // pred_check_branch
      %585 = sbr.rel (0) target = $region29
    $region28: #{tpu_custom_call.1} parent=1 // pred_region
      %s587 = ssub.s32 16, 16
      %588 = vsyncadd [#allocation4], %s587
      %591 = dma.smem_to_hbm [#allocation7], 16, %s2, [#allocation4]
    $region29: #{tpu_custom_call.1} parent=1 // pred_fallthru
      _
    // Predicated region
    $region30: #{tpu_custom_call.1} parent=1 // pred_check
      _
    $region31: #{tpu_custom_call.1} parent=1 // pred_check_branch
      %593 = sbr.rel (0) target = $region33
    $region32: #{tpu_custom_call.1} parent=1 // pred_region
      %594 = dma.done [#allocation4], 16
    $region33: #{tpu_custom_call.1} parent=1 // pred_fallthru
      _
    %595 = sfence
    %596 = vsyncpa [#allocation3], 1
    %597 = vsyncpa [#allocation6], 1
    %598 = vsyncpa [#allocation4], 1

</llo_original>
